<compile_context>
chip_gen: v7x
topology: tpu7x:2x2x1
jax: 0.10.0
libtpu: 0.0.40
codegen_flags: <defaults>
</compile_context>

<pallas_src>
import functools

import jax
import jax.numpy as jnp
from jax import lax
from jax.experimental import pallas as pl
from jax.experimental.pallas import tpu as pltpu


def _pick_bt(batch, per_batch_bytes, *, block_budget_bytes=3 << 20, min_grid=4):
    """Batch-tile size: fits a v5e-safe VMEM block budget, keeps the grid deep
    enough for pipelining/megacore, and divides `batch` exactly (so there is
    no ragged batch block and no wrapper-side batch padding)."""
    bt_budget = max(1, block_budget_bytes // max(per_batch_bytes, 1))
    depth_cap = (batch + min_grid - 1) // min_grid
    cap = max(1, min(batch, bt_budget, depth_cap))
    for d in range(cap, 0, -1):
        if batch % d == 0:
            return d
    return 1


def _pick_chunk(hw, bt, c, *, live_budget_bytes=32 * 1024):
    """Lane-aligned chunk width for streaming the (bt, C, HW) tile, keeping
    ~<=8 live f32 vregs per chunk (safe under the 4x partial unroll)."""
    target = max(128, (live_budget_bytes // (4 * bt * c)) // 128 * 128)
    aligned_hw = (hw // 128) * 128
    if aligned_hw == 0:
        return 128
    return min(target, aligned_hw)


def _channel_gate_kernel(x_ref, w1_ref, b1_ref, w2_ref, b2_ref, o_ref,
                         *, chunk, n_full, rem, inv_hw):
    bt, c, _ = x_ref.shape
    unroll = True if n_full <= 8 else 4

    # ---- Phase 1: chunked global sum/max pooling over the lane (HW) axis ----
    # No masking anywhere: the block covers exactly the valid HW extent.
    def pool_body(j, carry):
        s_acc, m_acc = carry
        start = pl.multiple_of(j * chunk, 128)
        xc = x_ref[:, :, pl.ds(start, chunk)].astype(jnp.float32)
        return (s_acc + jnp.sum(xc, axis=-1),
                jnp.maximum(m_acc, jnp.max(xc, axis=-1)))

    s_acc = jnp.zeros((bt, c), jnp.float32)
    m_acc = jnp.full((bt, c), -jnp.inf, jnp.float32)
    if n_full > 0:
        s_acc, m_acc = lax.fori_loop(0, n_full, pool_body, (s_acc, m_acc),
                                     unroll=unroll)
    if rem > 0:  # ragged (non-128-aligned) spatial tail: one static masked slice
        xt = x_ref[:, :, pl.ds(n_full * chunk, rem)].astype(jnp.float32)
        s_acc = s_acc + jnp.sum(xt, axis=-1)
        m_acc = jnp.maximum(m_acc, jnp.max(xt, axis=-1))

    avg_pool = s_acc * inv_hw                                      # (bt, c)

    # ---- Phase 2: shared MLP on avg & max pools, summed ----
    # mlp(avg)+mlp(max) = (relu(avg@W1+b1) + relu(max@W1+b1)) @ W2 + 2*b2
    w1 = w1_ref[...]
    b1 = b1_ref[...]
    h = (jnp.maximum(jnp.dot(avg_pool, w1, preferred_element_type=jnp.float32) + b1, 0.0) +
         jnp.maximum(jnp.dot(m_acc, w1, preferred_element_type=jnp.float32) + b1, 0.0))
    att = jnp.dot(h, w2_ref[...], preferred_element_type=jnp.float32) + 2.0 * b2_ref[...]
    scale = jax.nn.sigmoid(att)                                    # (bt, c)
    scale_b = scale[:, :, None]        # hoisted broadcast: built once per block

    # ---- Phase 3: chunked broadcast-multiply & lane-dense store ----
    def scale_body(j, carry):
        start = pl.multiple_of(j * chunk, 128)
        xc = x_ref[:, :, pl.ds(start, chunk)].astype(jnp.float32)
        o_ref[:, :, pl.ds(start, chunk)] = (xc * scale_b).astype(o_ref.dtype)
        return carry

    if n_full > 0:
        lax.fori_loop(0, n_full, scale_body, 0, unroll=unroll)
    if rem > 0:
        xt = x_ref[:, :, pl.ds(n_full * chunk, rem)].astype(jnp.float32)
        o_ref[:, :, pl.ds(n_full * chunk, rem)] = (xt * scale_b).astype(o_ref.dtype)


def channel_gate(x_nchw, w1, b1, w2, b2):
    """BAM ChannelGate: x * sigmoid(mlp(avg_pool(x)) + mlp(max_pool(x))).

    x_nchw: (B, C, H, W), float32 or bfloat16 (output matches x's dtype).
    w1: (C, C//r), b1: (1, C//r), w2: (C//r, C), b2: (1, C)  (row-vector form).
    """
    B, C, H, W = x_nchw.shape
    HW = H * W
    x_flat = x_nchw.reshape(B, C, HW)   # trailing-dim collapse: free (no copy)
    w1 = w1.astype(jnp.float32)
    b1 = b1.astype(jnp.float32)
    w2 = w2.astype(jnp.float32)
    b2 = b2.astype(jnp.float32)

    per_batch_bytes = C * HW * x_flat.dtype.itemsize
    bt = _pick_bt(B, per_batch_bytes)
    grid_b = B // bt                    # exact: bt divides B
    chunk = _pick_chunk(HW, bt, C)
    n_full, rem = HW // chunk, HW % chunk

    kernel = functools.partial(_channel_gate_kernel, chunk=chunk,
                               n_full=n_full, rem=rem, inv_hw=1.0 / float(HW))

    out_flat = pl.pallas_call(
        kernel,
        out_shape=jax.ShapeDtypeStruct((B, C, HW), x_flat.dtype),
        grid=(grid_b,),
        in_specs=[
            # Full C and HW per block (legal: equal to the full array dims),
            # so no spatial padding is ever materialized.
            pl.BlockSpec((bt, C, HW), lambda i: (i, 0, 0)),
            # Weights/biases: constant block index -> VMEM-resident across steps.
            pl.BlockSpec(w1.shape, lambda i: (0, 0)),
            pl.BlockSpec(b1.shape, lambda i: (0, 0)),
            pl.BlockSpec(w2.shape, lambda i: (0, 0)),
            pl.BlockSpec(b2.shape, lambda i: (0, 0)),
        ],
        out_specs=pl.BlockSpec((bt, C, HW), lambda i: (i, 0, 0)),
        compiler_params=pltpu.CompilerParams(
            dimension_semantics=("parallel",)),
    )(x_flat, w1, b1, w2, b2)

    return out_flat.reshape(B, C, H, W)


def reference(x, w1, b1, w2, b2):
    x32 = x.astype(jnp.float32)
    B, C, H, W = x.shape
    xf = x32.reshape(B, C, H * W)
    avg = xf.mean(axis=-1)
    mx = xf.max(axis=-1)

    def mlp(p):
        h = jnp.maximum(p @ w1 + b1, 0.0)
        return h @ w2 + b2

    scale = jax.nn.sigmoid(mlp(avg) + mlp(mx))
    return x32 * scale[:, :, None, None]


if __name__ == "__main__":
    # ChannelGate(gate_channels=32, reduction_ratio=16) -> hidden = 2
    C, r = 32, 16
    Ch = C // r

    key = jax.random.PRNGKey(0)
    kx, k1, k2, k3, k4 = jax.random.split(key, 5)
    # nn.Linear weights stored transposed for row-vector matmul.
    w1 = jax.random.normal(k1, (C, Ch), dtype=jnp.float32) * 0.1
    b1 = jax.random.normal(k2, (1, Ch), dtype=jnp.float32) * 0.1
    w2 = jax.random.normal(k3, (Ch, C), dtype=jnp.float32) * 0.1
    b2 = jax.random.normal(k4, (1, C), dtype=jnp.float32) * 0.1

    # Case 1: f32, 128-aligned spatial axis (HW = 256).
    x = jax.random.normal(kx, (2, C, 16, 16), dtype=jnp.float32)
    out = jax.block_until_ready(channel_gate(x, w1, b1, w2, b2))
    assert out.shape == x.shape and out.dtype == x.dtype
    assert jnp.allclose(out, reference(x, w1, b1, w2, b2), atol=1e-5, rtol=1e-5)

    # Case 2: f32, ragged spatial axis (HW = 169 -> one full chunk + masked tail).
    x2 = jax.random.normal(kx, (2, C, 13, 13), dtype=jnp.float32)
    out2 = jax.block_until_ready(channel_gate(x2, w1, b1, w2, b2))
    assert jnp.allclose(out2, reference(x2, w1, b1, w2, b2), atol=1e-5, rtol=1e-5)

    # Case 3: bf16 activations (halved HBM traffic; pooling/MLP stay f32 in-kernel).
    xb = x.astype(jnp.bfloat16)
    outb = jax.block_until_ready(channel_gate(xb, w1, b1, w2, b2))
    assert outb.dtype == jnp.bfloat16
    assert jnp.allclose(outb.astype(jnp.float32), reference(xb, w1, b1, w2, b2),
                        atol=5e-2, rtol=5e-2)

    print("KERNEL_OK")
</pallas_src>

<mosaic_0001>
module attributes {stable_mosaic.version = 11 : i64} {
  func.func @_channel_gate_kernel(%arg0: i32, %arg1: memref<1x32x256xf32, #tpu.memory_space<vmem>>, %arg2: memref<32x2xf32, #tpu.memory_space<vmem>>, %arg3: memref<1x2xf32, #tpu.memory_space<vmem>>, %arg4: memref<2x32xf32, #tpu.memory_space<vmem>>, %arg5: memref<1x32xf32, #tpu.memory_space<vmem>>, %arg6: memref<1x32x256xf32, #tpu.memory_space<vmem>>) attributes {dimension_semantics = [#tpu.dimension_semantics<parallel>], iteration_bounds = array<i64: 2>, scalar_prefetch = 0 : i64, scratch_operands = 0 : i64, tpu.core_type = #tpu.core_type<tc>, window_params = [{transform_indices = @transform_0, window_bounds = array<i64: 1, 32, 256>}, {pipeline_mode = #tpu.pipeline_mode<synchronous>, transform_indices = @transform_1, window_bounds = array<i64: 32, 2>}, {pipeline_mode = #tpu.pipeline_mode<synchronous>, transform_indices = @transform_2, window_bounds = array<i64: 1, 2>}, {pipeline_mode = #tpu.pipeline_mode<synchronous>, transform_indices = @transform_3, window_bounds = array<i64: 2, 32>}, {pipeline_mode = #tpu.pipeline_mode<synchronous>, transform_indices = @transform_4, window_bounds = array<i64: 1, 32>}, {transform_indices = @transform_5, window_bounds = array<i64: 1, 32, 256>}]} {
    %cst = arith.constant 0.000000e+00 : f32
    %0 = vector.broadcast %cst : f32 to vector<1x32xf32>
    %cst_0 = arith.constant 0xFF800000 : f32
    %1 = vector.broadcast %cst_0 : f32 to vector<1x32xf32>
    %c0_i32 = arith.constant 0 : i32
    %c256_i32 = arith.constant 256 : i32
    %2 = arith.muli %c0_i32, %c256_i32 : i32
    %3 = tpu.assume_multiple %2, 128 : i32
    %c0 = arith.constant 0 : index
    %c0_1 = arith.constant 0 : index
    %4 = arith.index_cast %3 : i32 to index
    %5 = vector.load %arg1[%c0, %c0_1, %4] : memref<1x32x256xf32, #tpu.memory_space<vmem>>, vector<1x32x256xf32>
    %cst_2 = arith.constant dense<0.000000e+00> : vector<1x32xf32>
    %6 = vector.multi_reduction <add>, %5, %cst_2 [2] : vector<1x32x256xf32> to vector<1x32xf32>
    %7 = arith.addf %0, %6 : vector<1x32xf32>
    %cst_3 = arith.constant dense<0xFF800000> : vector<1x32xf32>
    %8 = vector.multi_reduction <maximumf>, %5, %cst_3 [2] : vector<1x32x256xf32> to vector<1x32xf32>
    %9 = arith.maximumf %1, %8 : vector<1x32xf32>
    %c1_i32 = arith.constant 1 : i32
    %cst_4 = arith.constant 3.906250e-03 : f32
    %10 = vector.broadcast %cst_4 : f32 to vector<1x32xf32>
    %11 = arith.mulf %7, %10 : vector<1x32xf32>
    %c0_5 = arith.constant 0 : index
    %c0_6 = arith.constant 0 : index
    %12 = vector.load %arg2[%c0_5, %c0_6] : memref<32x2xf32, #tpu.memory_space<vmem>>, vector<32x2xf32>
    %c0_7 = arith.constant 0 : index
    %c0_8 = arith.constant 0 : index
    %13 = vector.load %arg3[%c0_7, %c0_8] : memref<1x2xf32, #tpu.memory_space<vmem>>, vector<1x2xf32>
    %cst_9 = arith.constant dense<0.000000e+00> : vector<1x2xf32>
    %14 = tpu.matmul %11, %12, %cst_9 {dimension_numbers = #tpu.dot_dimension_numbers<[1], [0], [0], [1], [0, 0, 1, 1], [], []>} : vector<1x32xf32>, vector<32x2xf32>, vector<1x2xf32> -> vector<1x2xf32>
    %15 = arith.addf %14, %13 : vector<1x2xf32>
    %cst_10 = arith.constant 0.000000e+00 : f32
    %16 = vector.broadcast %cst_10 : f32 to vector<1x2xf32>
    %17 = arith.maximumf %15, %16 : vector<1x2xf32>
    %cst_11 = arith.constant dense<0.000000e+00> : vector<1x2xf32>
    %18 = tpu.matmul %9, %12, %cst_11 {dimension_numbers = #tpu.dot_dimension_numbers<[1], [0], [0], [1], [0, 0, 1, 1], [], []>} : vector<1x32xf32>, vector<32x2xf32>, vector<1x2xf32> -> vector<1x2xf32>
    %19 = arith.addf %18, %13 : vector<1x2xf32>
    %cst_12 = arith.constant 0.000000e+00 : f32
    %20 = vector.broadcast %cst_12 : f32 to vector<1x2xf32>
    %21 = arith.maximumf %19, %20 : vector<1x2xf32>
    %22 = arith.addf %17, %21 : vector<1x2xf32>
    %c0_13 = arith.constant 0 : index
    %c0_14 = arith.constant 0 : index
    %23 = vector.load %arg4[%c0_13, %c0_14] : memref<2x32xf32, #tpu.memory_space<vmem>>, vector<2x32xf32>
    %cst_15 = arith.constant dense<0.000000e+00> : vector<1x32xf32>
    %24 = tpu.matmul %22, %23, %cst_15 {dimension_numbers = #tpu.dot_dimension_numbers<[1], [0], [0], [1], [0, 0, 1, 1], [], []>} : vector<1x2xf32>, vector<2x32xf32>, vector<1x32xf32> -> vector<1x32xf32>
    %c0_16 = arith.constant 0 : index
    %c0_17 = arith.constant 0 : index
    %25 = vector.load %arg5[%c0_16, %c0_17] : memref<1x32xf32, #tpu.memory_space<vmem>>, vector<1x32xf32>
    %cst_18 = arith.constant 2.000000e+00 : f32
    %26 = vector.broadcast %cst_18 : f32 to vector<1x32xf32>
    %27 = arith.mulf %26, %25 : vector<1x32xf32>
    %28 = arith.addf %24, %27 : vector<1x32xf32>
    %29 = arith.negf %28 : vector<1x32xf32>
    %30 = math.exp %29 : vector<1x32xf32>
    %cst_19 = arith.constant 1.000000e+00 : f32
    %31 = vector.broadcast %cst_19 : f32 to vector<1x32xf32>
    %32 = arith.addf %31, %30 : vector<1x32xf32>
    %33 = arith.divf %31, %32 : vector<1x32xf32>
    %34 = vector.shape_cast %33 : vector<1x32xf32> to vector<1x32x1xf32>
    %c0_i32_20 = arith.constant 0 : i32
    %c256_i32_21 = arith.constant 256 : i32
    %35 = arith.muli %c0_i32_20, %c256_i32_21 : i32
    %36 = tpu.assume_multiple %35, 128 : i32
    %c0_22 = arith.constant 0 : index
    %c0_23 = arith.constant 0 : index
    %37 = arith.index_cast %36 : i32 to index
    %38 = vector.load %arg1[%c0_22, %c0_23, %37] : memref<1x32x256xf32, #tpu.memory_space<vmem>>, vector<1x32x256xf32>
    %39 = vector.broadcast %34 : vector<1x32x1xf32> to vector<1x32x256xf32>
    %40 = arith.mulf %38, %39 : vector<1x32x256xf32>
    %c0_24 = arith.constant 0 : index
    %c0_25 = arith.constant 0 : index
    %41 = arith.index_cast %36 : i32 to index
    %42 = vector.load %arg6[%c0_24, %c0_25, %41] : memref<1x32x256xf32, #tpu.memory_space<vmem>>, vector<1x32x256xf32>
    tpu.vector_store %arg6[%c0_24, %c0_25, %41], %40 {strides = array<i32>} : memref<1x32x256xf32, #tpu.memory_space<vmem>>, vector<1x32x256xf32>,
    %c1_i32_26 = arith.constant 1 : i32
    return
  }
  func.func @transform_0(%arg0: i32) -> (i32, i32, i32) {
    %c0_i32 = arith.constant 0 : i32
    %c0_i32_0 = arith.constant 0 : i32
    %c0_i32_1 = arith.constant 0 : i32
    return %arg0, %c0_i32, %c0_i32_0 : i32, i32, i32
  }
  func.func @transform_1(%arg0: i32) -> (i32, i32) {
    %c0_i32 = arith.constant 0 : i32
    %c0_i32_0 = arith.constant 0 : i32
    %c0_i32_1 = arith.constant 0 : i32
    return %c0_i32, %c0_i32_0 : i32, i32
  }
  func.func @transform_2(%arg0: i32) -> (i32, i32) {
    %c0_i32 = arith.constant 0 : i32
    %c0_i32_0 = arith.constant 0 : i32
    %c0_i32_1 = arith.constant 0 : i32
    return %c0_i32, %c0_i32_0 : i32, i32
  }
  func.func @transform_3(%arg0: i32) -> (i32, i32) {
    %c0_i32 = arith.constant 0 : i32
    %c0_i32_0 = arith.constant 0 : i32
    %c0_i32_1 = arith.constant 0 : i32
    return %c0_i32, %c0_i32_0 : i32, i32
  }
  func.func @transform_4(%arg0: i32) -> (i32, i32) {
    %c0_i32 = arith.constant 0 : i32
    %c0_i32_0 = arith.constant 0 : i32
    %c0_i32_1 = arith.constant 0 : i32
    return %c0_i32, %c0_i32_0 : i32, i32
  }
  func.func @transform_5(%arg0: i32) -> (i32, i32, i32) {
    %c0_i32 = arith.constant 0 : i32
    %c0_i32_0 = arith.constant 0 : i32
    %c0_i32_1 = arith.constant 0 : i32
    return %arg0, %c0_i32, %c0_i32_0 : i32, i32, i32
  }
}

</mosaic_0001>

<llo_original>
// kernel: tpu_custom_call.1
$region0: #{tpu_custom_call.1}
  #allocation0 [shape = 'u32[]', space=smem, size = 0x4, offset = 0x4, fixed_abs, tag = 'smem constant byte address 0x4 - core index']
  #allocation1 [shape = 'u32[144,128]{1,0:T(1,128)}', space=vmem, size = 0x12000, scoped, tag = 'internal scratch']
  %s0 = inlined_call_operand.hbm [shape: f32[2,32,256], index: 0, kind: input, shape index: {}]
  %s1 = inlined_call_operand.vmem [shape: f32[32,2], index: 1, kind: input, shape index: {}]
  %s2 = inlined_call_operand.vmem [shape: f32[1,2], index: 2, kind: input, shape index: {}]
  %s3 = inlined_call_operand.vmem [shape: f32[2,32], index: 3, kind: input, shape index: {}]
  %s4 = inlined_call_operand.vmem [shape: f32[1,32], index: 4, kind: input, shape index: {}]
  %s5 = inlined_call_operand.hbm [shape: f32[2,32,256], index: 5, kind: output, shape index: {}]
  %s6 = sld [smem:[#allocation0]]
  $region57: #{tpu_custom_call.1} parent=0
    _
  %s8 = ssub.s32 1, %s6
  %s9 = scalar_select 0, %s8, %s6
  $region1: #{tpu_custom_call.1} parent=0
    #allocation2 [shape = 'u8[65536]{0}', space=vmem, size = 0x10000, scoped, tag = 'input window, operand 0']
    #allocation3 [shape = 's32[2]{0}', space=sflag, size = 0x8, scoped, tag = 'scoped memory for tpu_custom_call.1']
    #allocation4 [shape = 's32[2]{0}', space=sflag, size = 0x8, scoped, tag = 'scoped memory for tpu_custom_call.1']
    #allocation5 [shape = 'u8[65536]{0}', space=vmem, size = 0x10000, scoped, tag = 'output window, operand 0']
    %10 = vsyncpa [#allocation3], 0
    %s11 = scalar_lea.sflag [#allocation3], 1
    %12 = vsyncpa %s11, 0
    %13 = vsyncpa [#allocation4], 0
    %s14 = scalar_lea.sflag [#allocation4], 1
    %15 = vsyncpa %s14, 0
    loop: start=0, step=1, limit=4
    $region2: #{tpu_custom_call.1} parent=1 // loop_pre_header
      _
    $region3: #{tpu_custom_call.1} parent=1 // loop_header
      %s17 = sphi 0, %s21
      %p18 = scmp.ge.s32.totalorder %s17, 4
      %s27 = sphi 0, %s29
      %s30 = sphi 0, %s27
      %s31 = sphi 0, %s30
      %s47 = sphi 0, %s31
      %s51 = sphi 0, %s51
      %s53 = sphi 0, %s51
      %s54 = sphi 0, %s53
      %s68 = sphi 0, %s54
      %s72 = sphi 0, %s72
      %s74 = sphi 0, %s72
      %s75 = sphi 0, %s74
      %s89 = sphi 0, %s75
      %s93 = sphi 0, %s93
      %s95 = sphi 0, %s93
      %s96 = sphi 0, %s95
      %s110 = sphi 0, %s96
      %s114 = sphi 0, %s114
      %s116 = sphi 0, %s114
      %s117 = sphi 0, %s116
      %s131 = sphi 0, %s117
      %s137 = sphi 0, %s139
      %s140 = sphi 0, %s137
      %s141 = sphi 0, %s140
      %s157 = sphi 0, %s141
    $region4: #{tpu_custom_call.1} parent=1 // loop_header_branch
      %20 = sbr.rel (%p18) target = $region8
    $region5: #{tpu_custom_call.1} parent=1 // loop_body
      %s22 = ssub.s32 %s17, 1
      %s23 = ssub.s32 %s17, 2
      %s24 = sadd.s32 %s17, 1
      %s25 = ssub.s32 %s17, %s24
      %p26 = scmp.eq.s32.totalorder %s25, 0
      %s28 = sadd.s32 %s27, 1
      %s29 = scalar_select %p26, %s27, %s28
      %p32 = pneg %p26
      %p33 = scmp.eq.s32.totalorder %s17, 1
      %p34 = por %p32, %p33
      %p35 = scmp.ne.s32.totalorder %s27, %s30
      %p36 = scmp.eq.s32.totalorder %s17, 0
      %p37 = por %p35, %p36
      %p38 = scmp.ne.s32.totalorder %s27, %s30
      %p39 = scmp.eq.s32.totalorder %s22, 1
      %p40 = por %p38, %p39
      %p41 = scmp.ne.s32.totalorder %s30, %s31
      %p42 = scmp.eq.s32.totalorder %s22, 0
      %p43 = por %p41, %p42
      %p44 = scmp.ne.s32.totalorder %s30, %s31
      %p45 = scmp.eq.s32.totalorder %s23, 1
      %p46 = por %p44, %p45
      %p48 = scmp.ne.s32.totalorder %s31, %s47
      %p49 = scmp.eq.s32.totalorder %s23, 0
      %p50 = por %p48, %p49
      %s52 = sadd.s32 %s51, 1
      %p55 = scmp.eq.s32.totalorder %s17, 1
      %p56 = scmp.ne.s32.totalorder %s51, %s53
      %p57 = scmp.eq.s32.totalorder %s17, 0
      %p58 = por %p56, %p57
      %p59 = scmp.ne.s32.totalorder %s51, %s53
      %p60 = scmp.eq.s32.totalorder %s22, 1
      %p61 = por %p59, %p60
      %p62 = scmp.ne.s32.totalorder %s53, %s54
      %p63 = scmp.eq.s32.totalorder %s22, 0
      %p64 = por %p62, %p63
      %p65 = scmp.ne.s32.totalorder %s53, %s54
      %p66 = scmp.eq.s32.totalorder %s23, 1
      %p67 = por %p65, %p66
      %p69 = scmp.ne.s32.totalorder %s54, %s68
      %p70 = scmp.eq.s32.totalorder %s23, 0
      %p71 = por %p69, %p70
      %s73 = sadd.s32 %s72, 1
      %p76 = scmp.eq.s32.totalorder %s17, 1
      %p77 = scmp.ne.s32.totalorder %s72, %s74
      %p78 = scmp.eq.s32.totalorder %s17, 0
      %p79 = por %p77, %p78
      %p80 = scmp.ne.s32.totalorder %s72, %s74
      %p81 = scmp.eq.s32.totalorder %s22, 1
      %p82 = por %p80, %p81
      %p83 = scmp.ne.s32.totalorder %s74, %s75
      %p84 = scmp.eq.s32.totalorder %s22, 0
      %p85 = por %p83, %p84
      %p86 = scmp.ne.s32.totalorder %s74, %s75
      %p87 = scmp.eq.s32.totalorder %s23, 1
      %p88 = por %p86, %p87
      %p90 = scmp.ne.s32.totalorder %s75, %s89
      %p91 = scmp.eq.s32.totalorder %s23, 0
      %p92 = por %p90, %p91
      %s94 = sadd.s32 %s93, 1
      %p97 = scmp.eq.s32.totalorder %s17, 1
      %p98 = scmp.ne.s32.totalorder %s93, %s95
      %p99 = scmp.eq.s32.totalorder %s17, 0
      %p100 = por %p98, %p99
      %p101 = scmp.ne.s32.totalorder %s93, %s95
      %p102 = scmp.eq.s32.totalorder %s22, 1
      %p103 = por %p101, %p102
      %p104 = scmp.ne.s32.totalorder %s95, %s96
      %p105 = scmp.eq.s32.totalorder %s22, 0
      %p106 = por %p104, %p105
      %p107 = scmp.ne.s32.totalorder %s95, %s96
      %p108 = scmp.eq.s32.totalorder %s23, 1
      %p109 = por %p107, %p108
      %p111 = scmp.ne.s32.totalorder %s96, %s110
      %p112 = scmp.eq.s32.totalorder %s23, 0
      %p113 = por %p111, %p112
      %s115 = sadd.s32 %s114, 1
      %p118 = scmp.eq.s32.totalorder %s17, 1
      %p119 = scmp.ne.s32.totalorder %s114, %s116
      %p120 = scmp.eq.s32.totalorder %s17, 0
      %p121 = por %p119, %p120
      %p122 = scmp.ne.s32.totalorder %s114, %s116
      %p123 = scmp.eq.s32.totalorder %s22, 1
      %p124 = por %p122, %p123
      %p125 = scmp.ne.s32.totalorder %s116, %s117
      %p126 = scmp.eq.s32.totalorder %s22, 0
      %p127 = por %p125, %p126
      %p128 = scmp.ne.s32.totalorder %s116, %s117
      %p129 = scmp.eq.s32.totalorder %s23, 1
      %p130 = por %p128, %p129
      %p132 = scmp.ne.s32.totalorder %s117, %s131
      %p133 = scmp.eq.s32.totalorder %s23, 0
      %p134 = por %p132, %p133
      %s135 = ssub.s32 %s17, %s24
      %p136 = scmp.eq.s32.totalorder %s135, 0
      %s138 = sadd.s32 %s137, 1
      %s139 = scalar_select %p136, %s137, %s138
      %p142 = pneg %p136
      %p143 = scmp.eq.s32.totalorder %s17, 1
      %p144 = por %p142, %p143
      %p145 = scmp.ne.s32.totalorder %s137, %s140
      %p146 = scmp.eq.s32.totalorder %s17, 0
      %p147 = por %p145, %p146
      %p148 = scmp.ne.s32.totalorder %s137, %s140
      %p149 = scmp.eq.s32.totalorder %s22, 1
      %p150 = por %p148, %p149
      %p151 = scmp.ne.s32.totalorder %s140, %s141
      %p152 = scmp.eq.s32.totalorder %s22, 0
      %p153 = por %p151, %p152
      %p154 = scmp.ne.s32.totalorder %s140, %s141
      %p155 = scmp.eq.s32.totalorder %s23, 1
      %p156 = por %p154, %p155
      %p158 = scmp.ne.s32.totalorder %s141, %s157
      %p159 = scmp.eq.s32.totalorder %s23, 0
      %p160 = por %p158, %p159
      %p161 = scmp.le.s32.totalorder 1, %s17
      %p162 = scmp.lt.s32.totalorder %s17, 3
      %p163 = pnand %p161, %p162
      %p164 = pneg %p163
      // Predicated region
      $region9: #{tpu_custom_call.1} parent=5 // pred_check
        _
      $region10: #{tpu_custom_call.1} parent=5 // pred_check_branch
        %166 = sbr.rel (%p163) target = $region12
      $region11: #{tpu_custom_call.1} parent=5 // pred_region
        %s167 = ssub.s32 %s17, 1
        // Predicated region
        $region13: #{tpu_custom_call.1} parent=11 // pred_check
          %p168 = pneg %p64
        $region14: #{tpu_custom_call.1} parent=11 // pred_check_branch
          %170 = sbr.rel (%p168) target = $region16
        $region15: #{tpu_custom_call.1} parent=11 // pred_region
          _
        $region16: #{tpu_custom_call.1} parent=11 // pred_fallthru
          _
        // Predicated region
        $region17: #{tpu_custom_call.1} parent=11 // pred_check
          %p171 = pneg %p85
        $region18: #{tpu_custom_call.1} parent=11 // pred_check_branch
          %173 = sbr.rel (%p171) target = $region20
        $region19: #{tpu_custom_call.1} parent=11 // pred_region
          _
        $region20: #{tpu_custom_call.1} parent=11 // pred_fallthru
          _
        // Predicated region
        $region21: #{tpu_custom_call.1} parent=11 // pred_check
          %p174 = pneg %p106
        $region22: #{tpu_custom_call.1} parent=11 // pred_check_branch
          %176 = sbr.rel (%p174) target = $region24
        $region23: #{tpu_custom_call.1} parent=11 // pred_region
          _
        $region24: #{tpu_custom_call.1} parent=11 // pred_fallthru
          _
        // Predicated region
        $region25: #{tpu_custom_call.1} parent=11 // pred_check
          %p177 = pneg %p127
        $region26: #{tpu_custom_call.1} parent=11 // pred_check_branch
          %179 = sbr.rel (%p177) target = $region28
        $region27: #{tpu_custom_call.1} parent=11 // pred_region
          _
        $region28: #{tpu_custom_call.1} parent=11 // pred_fallthru
          _
      $region12: #{tpu_custom_call.1} parent=5 // pred_fallthru
        _
      %p180 = scmp.lt.s32.totalorder %s17, 2
      // Predicated region
      $region29: #{tpu_custom_call.1} parent=5 // pred_check
        %p181 = pneg %p180
      $region30: #{tpu_custom_call.1} parent=5 // pred_check_branch
        %183 = sbr.rel (%p181) target = $region32
      $region31: #{tpu_custom_call.1} parent=5 // pred_region
        // Predicated region
        $region33: #{tpu_custom_call.1} parent=31 // pred_check
          %p184 = pneg %p37
        $region34: #{tpu_custom_call.1} parent=31 // pred_check_branch
          %186 = sbr.rel (%p184) target = $region36
        $region35: #{tpu_custom_call.1} parent=31 // pred_region
          %s187 = sand.u32 %s27, 1
          %s188 = scalar_lea.sflag [#allocation3], %s187
          %s189 = sand.u32 %s27, 1
          %s190 = smul.addr %s189, 64
          %s191 = scalar_lea.vmem [#allocation2], %s190
          %s193 = ssub.s32 1024, 1024
          %194 = vsyncadd %s188, %s193
          %s195 = smul.addr %s17, 8
          %s196 = smul.addr %s195, 128
          %s197 = scalar_lea.hbm %s0, %s196
          %s198 = sshll.u32 %s191, 4
          %s199 = int_to_ptr.vmem [resolvable:$true] %s198
          %204 = dma.hbm_to_vmem [thread:$0]  %s197, 1024, %s199, %s188, 256, 256, 16
        $region36: #{tpu_custom_call.1} parent=31 // pred_fallthru
          _
      $region32: #{tpu_custom_call.1} parent=5 // pred_fallthru
        _
      %p205 = scmp.le.s32.totalorder 1, %s17
      %p206 = scmp.lt.s32.totalorder %s17, 3
      %p207 = pnand %p205, %p206
      %p208 = pneg %p207
      // Predicated region
      $region37: #{tpu_custom_call.1} parent=5 // pred_check
        _
      $region38: #{tpu_custom_call.1} parent=5 // pred_check_branch
        %210 = sbr.rel (%p207) target = $region40
      $region39: #{tpu_custom_call.1} parent=5 // pred_region
        %s211 = ssub.s32 %s17, 1
        %s212 = sand.u32 %s30, 1
        %s213 = scalar_lea.sflag [#allocation3], %s212
        %s214 = sand.u32 %s30, 1
        %s215 = smul.addr %s214, 64
        %s216 = scalar_lea.vmem [#allocation2], %s215
        // Predicated region
        $region41: #{tpu_custom_call.1} parent=39 // pred_check
          %p217 = pneg %p43
        $region42: #{tpu_custom_call.1} parent=39 // pred_check_branch
          %219 = sbr.rel (%p217) target = $region44
        $region43: #{tpu_custom_call.1} parent=39 // pred_region
          %220 = dma.done %s213, 1024
        $region44: #{tpu_custom_call.1} parent=39 // pred_fallthru
          _
        %s221 = sand.u32 %s30, 1
        %s222 = scalar_lea.sflag [#allocation3], %s221
        %s223 = sand.u32 %s30, 1
        %s224 = smul.addr %s223, 64
        %s225 = scalar_lea.vmem [#allocation2], %s224
        %p226 = pneg %p43
        %p227 = pneg %p40
        %p228 = pneg %p64
        %p229 = pneg %p61
        %p230 = pneg %p85
        %p231 = pneg %p82
        %p232 = pneg %p106
        %p233 = pneg %p103
        %p234 = pneg %p127
        %p235 = pneg %p124
        %p236 = pneg %p153
        %p237 = pneg %p150
        %s238 = sand.u32 %s140, 1
        %s239 = scalar_lea.sflag [#allocation4], %s238
        %s240 = sand.u32 %s140, 1
        %s241 = smul.addr %s240, 64
        %s242 = scalar_lea.vmem [#allocation5], %s241
        %v243 = vld [vmem:[%s216] sm:$0xff]
        %v244 = vld [vmem:[%s216 + $0x8] sm:$0xff]
        %v245 = vld [vmem:[%s216 + $0x10] sm:$0xff]
        %v246 = vld [vmem:[%s216 + $0x18] sm:$0xff]
        %v247 = vld [vmem:[%s216 + $0x20] sm:$0xff]
        %v248 = vld [vmem:[%s216 + $0x28] sm:$0xff]
        %v249 = vld [vmem:[%s216 + $0x30] sm:$0xff]
        %v250 = vld [vmem:[%s216 + $0x38] sm:$0xff]
        %v251 = vadd.f32 %v243, %v244
        %252 = vadd.xlane.f32.xlu0 %v251
        %v253 = vpop.xlane.xlu0 %252
        %v254 = vadd.f32 %v245, %v246
        %255 = vadd.xlane.f32.xlu0 %v254
        %v256 = vpop.xlane.xlu0 %255
        %v257 = vadd.f32 %v247, %v248
        %258 = vadd.xlane.f32.xlu0 %v257
        %v259 = vpop.xlane.xlu0 %258
        %v260 = vadd.f32 %v249, %v250
        %261 = vadd.xlane.f32.xlu0 %v260
        %v262 = vpop.xlane.xlu0 %261
        %v263 = vadd.f32 %v253, 0.0
        %v264 = vadd.f32 %v256, 0.0
        %v265 = vadd.f32 %v259, 0.0
        %v266 = vadd.f32 %v262, 0.0
        %v267 = vmax.f32 %v243, %v244
        %268 = vmax.xlane.f32.xlu0 %v267
        %v269 = vpop.xlane.xlu0 %268
        %v270 = vmax.f32 %v245, %v246
        %271 = vmax.xlane.f32.xlu0 %v270
        %v272 = vpop.xlane.xlu0 %271
        %v273 = vmax.f32 %v247, %v248
        %274 = vmax.xlane.f32.xlu0 %v273
        %v275 = vpop.xlane.xlu0 %274
        %v276 = vmax.f32 %v249, %v250
        %277 = vmax.xlane.f32.xlu0 %v276
        %v278 = vpop.xlane.xlu0 %277
        %v279 = vmul.f32 %v263, 0.00390625
        %v280 = vmul.f32 %v264, 0.00390625
        %v281 = vmul.f32 %v265, 0.00390625
        %v282 = vmul.f32 %v266, 0.00390625
        %v283 = vld [vmem:[%s1] sm:$0xff]
        %v284 = vld [vmem:[%s1 + $0x8] sm:$0xff]
        %v285 = vld [vmem:[%s1 + $0x10] sm:$0xff]
        %v286 = vld [vmem:[%s1 + $0x18] sm:$0xff]
        %v287 = vld [vmem:[%s2] sm:$0x1]
        %v292 = vlaneseq
        %v293 = vand.u32 %v292, 127
        %v294 = vlaneseq
        %v295 = vshrl.u32 %v294, 7
        %v296 = vsub.s32 %v293, %v295
        %v297 = vrot.slane %v279, %v296
        %v298 = vadd.s32 %v293, 4294967288
        %v299 = vlaneseq
        %v300 = vshrl.u32 %v299, 7
        %v301 = vsub.s32 %v298, %v300
        %v302 = vrot.slane %v280, %v301
        %vm303 = vcmask 130112
        %v304 = vsel %vm303, %v302, %v297
        %v305 = vadd.s32 %v293, 4294967280
        %v306 = vlaneseq
        %v307 = vshrl.u32 %v306, 7
        %v308 = vsub.s32 %v305, %v307
        %v309 = vrot.slane %v281, %v308
        %vm310 = vcmask 195712
        %v311 = vsel %vm310, %v309, %v304
        %v312 = vadd.s32 %v293, 4294967272
        %v313 = vlaneseq
        %v314 = vshrl.u32 %v313, 7
        %v315 = vsub.s32 %v312, %v314
        %v316 = vrot.slane %v282, %v315
        %vm317 = vcmask 261312
        %v318 = vsel %vm317, %v316, %v311
        %vm319 = vcmask 261120
        %v320 = vsel %vm319, %v318, 0
        %322 = vmatprep.subr.mxu0 0.0
        %323 = vmatpush1.msra.mxu0 %v283
        %324 = vmatprep.subr.mxu0 0.0
        %325 = vmatpush1.msra.mxu0 %v284
        %326 = vmatprep.subr.mxu0 0.0
        %327 = vmatpush1.msra.mxu0 %v285
        %328 = vmatprep.subr.mxu0 0.0
        %329 = vmatpush1.msra.mxu0 %v286
        %330 = vmatprep.subr.mxu0 0.0
        %331 = vmatpush1.msra.mxu0 0.0
        %332 = vmatprep.subr.mxu0 0.0
        %333 = vmatpush1.msra.mxu0 0.0
        %334 = vmatprep.subr.mxu0 0.0
        %335 = vmatpush1.msra.mxu0 0.0
        %336 = vmatprep.subr.mxu0 0.0
        %337 = vmatpush1.msra.mxu0 0.0
        %338 = vmatprep.subr.mxu0 0.0
        %339 = vmatpush1.msra.mxu0 0.0
        %340 = vmatprep.subr.mxu0 0.0
        %341 = vmatpush1.msra.mxu0 0.0
        %342 = vmatprep.subr.mxu0 0.0
        %343 = vmatpush1.msra.mxu0 0.0
        %344 = vmatprep.subr.mxu0 0.0
        %345 = vmatpush1.msra.mxu0 0.0
        %346 = vmatprep.subr.mxu0 0.0
        %347 = vmatpush1.msra.mxu0 0.0
        %348 = vmatprep.subr.mxu0 0.0
        %349 = vmatpush1.msra.mxu0 0.0
        %350 = vmatprep.subr.mxu0 0.0
        %351 = vmatpush1.msra.mxu0 0.0
        %352 = vmatprep.subr.mxu0 0.0
        %353 = vmatpush1.msra.mxu0 0.0
        %354 = vmatprep.subr.mxu0 0.0
        %355 = vmatpush1.msra.mxu0 0.0
        %356 = vmatprep.subr.mxu0 0.0
        %357 = vmatpush1.msra.mxu0 0.0
        %358 = vmatprep.subr.mxu0 0.0
        %359 = vmatpush1.msra.mxu0 0.0
        %360 = vmatprep.subr.mxu0 0.0
        %361 = vmatpush1.msra.mxu0 0.0
        %362 = vmatprep.subr.mxu0 0.0
        %363 = vmatpush1.msra.mxu0 0.0
        %364 = vmatprep.subr.mxu0 0.0
        %365 = vmatpush1.msra.mxu0 0.0
        %366 = vmatprep.subr.mxu0 0.0
        %367 = vmatpush1.msra.mxu0 0.0
        %368 = vmatprep.subr.mxu0 0.0
        %369 = vmatpush1.msra.mxu0 0.0
        %370 = vmatprep.subr.mxu0 0.0
        %371 = vmatpush1.msra.mxu0 0.0
        %372 = vmatprep.subr.mxu0 0.0
        %373 = vmatpush1.msra.mxu0 0.0
        %374 = vmatprep.subr.mxu0 0.0
        %375 = vmatpush1.msra.mxu0 0.0
        %376 = vmatprep.subr.mxu0 0.0
        %377 = vmatpush1.msra.mxu0 0.0
        %378 = vmatprep.subr.mxu0 0.0
        %379 = vmatpush1.msra.mxu0 0.0
        %380 = vmatprep.subr.mxu0 0.0
        %381 = vmatpush1.msra.mxu0 0.0
        %382 = vmatprep.subr.mxu0 0.0
        %383 = vmatpush1.msra.mxu0 0.0
        %384 = vmatprep.subr.mxu0 0.0
        %385 = vmatpush1.msra.mxu0 0.0
        %386 = vmatprep.mubr.f32.mxu0 0.0
        %387 = vmatmul.mubr.f32.gmra.mrb[0].mxu0 %v320
        %v388 = vpop.f32.mrb[0].mxu0
        %v389 = vadd.f32 %v287, %v388
        %v390 = vpop.f32.mrb[0].mxu0
        %391 = vdwg.mxu0
        %v392 = vmax.f32 %v389, 0.0
        %v397 = vlaneseq
        %v398 = vshrl.u32 %v397, 7
        %v399 = vsub.s32 %v293, %v398
        %v400 = vrot.slane %v269, %v399
        %v401 = vlaneseq
        %v402 = vshrl.u32 %v401, 7
        %v403 = vsub.s32 %v298, %v402
        %v404 = vrot.slane %v272, %v403
        %v405 = vsel %vm303, %v404, %v400
        %v406 = vlaneseq
        %v407 = vshrl.u32 %v406, 7
        %v408 = vsub.s32 %v305, %v407
        %v409 = vrot.slane %v275, %v408
        %v410 = vsel %vm310, %v409, %v405
        %v411 = vlaneseq
        %v412 = vshrl.u32 %v411, 7
        %v413 = vsub.s32 %v312, %v412
        %v414 = vrot.slane %v278, %v413
        %v415 = vsel %vm317, %v414, %v410
        %v416 = vsel %vm319, %v415, 0
        %418 = vmatprep.subr.mxu0 0.0
        %419 = vmatpush1.msra.mxu0 %v283
        %420 = vmatprep.subr.mxu0 0.0
        %421 = vmatpush1.msra.mxu0 %v284
        %422 = vmatprep.subr.mxu0 0.0
        %423 = vmatpush1.msra.mxu0 %v285
        %424 = vmatprep.subr.mxu0 0.0
        %425 = vmatpush1.msra.mxu0 %v286
        %426 = vmatprep.subr.mxu0 0.0
        %427 = vmatpush1.msra.mxu0 0.0
        %428 = vmatprep.subr.mxu0 0.0
        %429 = vmatpush1.msra.mxu0 0.0
        %430 = vmatprep.subr.mxu0 0.0
        %431 = vmatpush1.msra.mxu0 0.0
        %432 = vmatprep.subr.mxu0 0.0
        %433 = vmatpush1.msra.mxu0 0.0
        %434 = vmatprep.subr.mxu0 0.0
        %435 = vmatpush1.msra.mxu0 0.0
        %436 = vmatprep.subr.mxu0 0.0
        %437 = vmatpush1.msra.mxu0 0.0
        %438 = vmatprep.subr.mxu0 0.0
        %439 = vmatpush1.msra.mxu0 0.0
        %440 = vmatprep.subr.mxu0 0.0
        %441 = vmatpush1.msra.mxu0 0.0
        %442 = vmatprep.subr.mxu0 0.0
        %443 = vmatpush1.msra.mxu0 0.0
        %444 = vmatprep.subr.mxu0 0.0
        %445 = vmatpush1.msra.mxu0 0.0
        %446 = vmatprep.subr.mxu0 0.0
        %447 = vmatpush1.msra.mxu0 0.0
        %448 = vmatprep.subr.mxu0 0.0
        %449 = vmatpush1.msra.mxu0 0.0
        %450 = vmatprep.subr.mxu0 0.0
        %451 = vmatpush1.msra.mxu0 0.0
        %452 = vmatprep.subr.mxu0 0.0
        %453 = vmatpush1.msra.mxu0 0.0
        %454 = vmatprep.subr.mxu0 0.0
        %455 = vmatpush1.msra.mxu0 0.0
        %456 = vmatprep.subr.mxu0 0.0
        %457 = vmatpush1.msra.mxu0 0.0
        %458 = vmatprep.subr.mxu0 0.0
        %459 = vmatpush1.msra.mxu0 0.0
        %460 = vmatprep.subr.mxu0 0.0
        %461 = vmatpush1.msra.mxu0 0.0
        %462 = vmatprep.subr.mxu0 0.0
        %463 = vmatpush1.msra.mxu0 0.0
        %464 = vmatprep.subr.mxu0 0.0
        %465 = vmatpush1.msra.mxu0 0.0
        %466 = vmatprep.subr.mxu0 0.0
        %467 = vmatpush1.msra.mxu0 0.0
        %468 = vmatprep.subr.mxu0 0.0
        %469 = vmatpush1.msra.mxu0 0.0
        %470 = vmatprep.subr.mxu0 0.0
        %471 = vmatpush1.msra.mxu0 0.0
        %472 = vmatprep.subr.mxu0 0.0
        %473 = vmatpush1.msra.mxu0 0.0
        %474 = vmatprep.subr.mxu0 0.0
        %475 = vmatpush1.msra.mxu0 0.0
        %476 = vmatprep.subr.mxu0 0.0
        %477 = vmatpush1.msra.mxu0 0.0
        %478 = vmatprep.subr.mxu0 0.0
        %479 = vmatpush1.msra.mxu0 0.0
        %480 = vmatprep.subr.mxu0 0.0
        %481 = vmatpush1.msra.mxu0 0.0
        %482 = vmatprep.mubr.f32.mxu0 0.0
        %483 = vmatmul.mubr.f32.gmra.mrb[0].mxu0 %v416
        %v484 = vpop.f32.mrb[0].mxu0
        %v485 = vadd.f32 %v287, %v484
        %v486 = vpop.f32.mrb[0].mxu0
        %487 = vdwg.mxu0
        %v488 = vmax.f32 %v485, 0.0
        %v489 = vadd.f32 %v392, %v488
        %v490 = vld [vmem:[%s3] sm:$0x3]
        %v491 = vld [vmem:[%s4] sm:$0x1]
        %v492 = vmul.f32 %v491, 2.0
        %vm493 = vcmask 15360
        %v495 = vsel %vm493, %v489, 0
        %vm497 = vcmask 1041408
        %v499 = vsel %vm497, %v490, 0
        %501 = vmatprep.subr.mxu0 0.0
        %502 = vmatpush1.msra.mxu0 %v499
        %503 = vmatprep.subr.mxu0 0.0
        %504 = vmatpush1.msra.mxu0 0.0
        %505 = vmatprep.subr.mxu0 0.0
        %506 = vmatpush1.msra.mxu0 0.0
        %507 = vmatprep.subr.mxu0 0.0
        %508 = vmatpush1.msra.mxu0 0.0
        %509 = vmatprep.subr.mxu0 0.0
        %510 = vmatpush1.msra.mxu0 0.0
        %511 = vmatprep.subr.mxu0 0.0
        %512 = vmatpush1.msra.mxu0 0.0
        %513 = vmatprep.subr.mxu0 0.0
        %514 = vmatpush1.msra.mxu0 0.0
        %515 = vmatprep.subr.mxu0 0.0
        %516 = vmatpush1.msra.mxu0 0.0
        %517 = vmatprep.subr.mxu0 0.0
        %518 = vmatpush1.msra.mxu0 0.0
        %519 = vmatprep.subr.mxu0 0.0
        %520 = vmatpush1.msra.mxu0 0.0
        %521 = vmatprep.subr.mxu0 0.0
        %522 = vmatpush1.msra.mxu0 0.0
        %523 = vmatprep.subr.mxu0 0.0
        %524 = vmatpush1.msra.mxu0 0.0
        %525 = vmatprep.subr.mxu0 0.0
        %526 = vmatpush1.msra.mxu0 0.0
        %527 = vmatprep.subr.mxu0 0.0
        %528 = vmatpush1.msra.mxu0 0.0
        %529 = vmatprep.subr.mxu0 0.0
        %530 = vmatpush1.msra.mxu0 0.0
        %531 = vmatprep.subr.mxu0 0.0
        %532 = vmatpush1.msra.mxu0 0.0
        %533 = vmatprep.subr.mxu0 0.0
        %534 = vmatpush1.msra.mxu0 0.0
        %535 = vmatprep.subr.mxu0 0.0
        %536 = vmatpush1.msra.mxu0 0.0
        %537 = vmatprep.subr.mxu0 0.0
        %538 = vmatpush1.msra.mxu0 0.0
        %539 = vmatprep.subr.mxu0 0.0
        %540 = vmatpush1.msra.mxu0 0.0
        %541 = vmatprep.subr.mxu0 0.0
        %542 = vmatpush1.msra.mxu0 0.0
        %543 = vmatprep.subr.mxu0 0.0
        %544 = vmatpush1.msra.mxu0 0.0
        %545 = vmatprep.subr.mxu0 0.0
        %546 = vmatpush1.msra.mxu0 0.0
        %547 = vmatprep.subr.mxu0 0.0
        %548 = vmatpush1.msra.mxu0 0.0
        %549 = vmatprep.subr.mxu0 0.0
        %550 = vmatpush1.msra.mxu0 0.0
        %551 = vmatprep.subr.mxu0 0.0
        %552 = vmatpush1.msra.mxu0 0.0
        %553 = vmatprep.subr.mxu0 0.0
        %554 = vmatpush1.msra.mxu0 0.0
        %555 = vmatprep.subr.mxu0 0.0
        %556 = vmatpush1.msra.mxu0 0.0
        %557 = vmatprep.subr.mxu0 0.0
        %558 = vmatpush1.msra.mxu0 0.0
        %559 = vmatprep.subr.mxu0 0.0
        %560 = vmatpush1.msra.mxu0 0.0
        %561 = vmatprep.subr.mxu0 0.0
        %562 = vmatpush1.msra.mxu0 0.0
        %563 = vmatprep.subr.mxu0 0.0
        %564 = vmatpush1.msra.mxu0 0.0
        %565 = vmatprep.mubr.f32.mxu0 0.0
        %566 = vmatmul.mubr.f32.gmra.mrb[0].mxu0 %v495
        %v567 = vpop.f32.mrb[0].mxu0
        %v568 = vadd.f32 %v492, %v567
        %v569 = vpop.f32.mrb[0].mxu0
        %570 = vdwg.mxu0
        %v571 = vxor.u32 %v568, 2147483648
        %v572 = vmul.f32 %v571, 1.442695
        %v573 = vpow.pop %v572
        %v574 = vadd.f32 %v573, 1.0
        %v575 = vrcp.pop %v574
        %v576 = vmul.f32 1.0, %v575
        %v577 = vlaneseq
        %v578 = vshrl.u32 %v577, 7
        %v579 = vsub.s32 0, %v578
        %v580 = vrot.slane %v576, %v579
        %582 = vbcast.lane.b32.xlu0 %v580, 256
        %v583 = vpop.permute.xlu0 %582
        %s585 = sor.u32 256, 8
        %586 = vbcast.lane.b32.xlu0 %v580, %s585
        %v587 = vpop.permute.xlu0 %586
        %s589 = sor.u32 256, 16
        %590 = vbcast.lane.b32.xlu0 %v580, %s589
        %v591 = vpop.permute.xlu0 %590
        %s593 = sor.u32 256, 24
        %594 = vbcast.lane.b32.xlu0 %v580, %s593
        %v595 = vpop.permute.xlu0 %594
        %v596 = vmul.f32 %v243, %v583
        %v597 = vmul.f32 %v244, %v583
        %v598 = vmul.f32 %v245, %v587
        %v599 = vmul.f32 %v246, %v587
        %v600 = vmul.f32 %v247, %v591
        %v601 = vmul.f32 %v248, %v591
        %v602 = vmul.f32 %v249, %v595
        %v603 = vmul.f32 %v250, %v595
        %604 = vst [vmem:[%s242] sm:$0xff] %v596
        %605 = vst [vmem:[%s242 + $0x8] sm:$0xff] %v597
        %606 = vst [vmem:[%s242 + $0x10] sm:$0xff] %v598
        %607 = vst [vmem:[%s242 + $0x18] sm:$0xff] %v599
        %608 = vst [vmem:[%s242 + $0x20] sm:$0xff] %v600
        %609 = vst [vmem:[%s242 + $0x28] sm:$0xff] %v601
        %610 = vst [vmem:[%s242 + $0x30] sm:$0xff] %v602
        %611 = vst [vmem:[%s242 + $0x38] sm:$0xff] %v603
        %s612 = sand.u32 %s140, 1
        %s613 = scalar_lea.sflag [#allocation4], %s612
        %s614 = sand.u32 %s140, 1
        %s615 = smul.addr %s614, 64
        %s616 = scalar_lea.vmem [#allocation5], %s615
        // Predicated region
        $region45: #{tpu_custom_call.1} parent=39 // pred_check
          %p617 = pneg %p150
        $region46: #{tpu_custom_call.1} parent=39 // pred_check_branch
          %619 = sbr.rel (%p617) target = $region48
        $region47: #{tpu_custom_call.1} parent=39 // pred_region
          %s621 = ssub.s32 1024, 1024
          %622 = vsyncadd %s613, %s621
          %s623 = smul.addr %s22, 8
          %s624 = smul.addr %s623, 128
          %s625 = scalar_lea.hbm %s5, %s624
          %s626 = sshll.u32 %s616, 4
          %s627 = int_to_ptr.vmem [resolvable:$true] %s626
          %632 = dma.vmem_to_hbm [thread:$0]  %s627, 1024, %s625, %s613, 256, 256, 16
        $region48: #{tpu_custom_call.1} parent=39 // pred_fallthru
          _
      $region40: #{tpu_custom_call.1} parent=5 // pred_fallthru
        _
      %p633 = scmp.le.s32.totalorder 2, %s17
      // Predicated region
      $region49: #{tpu_custom_call.1} parent=5 // pred_check
        %p634 = pneg %p633
      $region50: #{tpu_custom_call.1} parent=5 // pred_check_branch
        %636 = sbr.rel (%p634) target = $region52
      $region51: #{tpu_custom_call.1} parent=5 // pred_region
        %s637 = ssub.s32 %s17, 2
        // Predicated region
        $region53: #{tpu_custom_call.1} parent=51 // pred_check
          %p638 = pneg %p156
        $region54: #{tpu_custom_call.1} parent=51 // pred_check_branch
          %640 = sbr.rel (%p638) target = $region56
        $region55: #{tpu_custom_call.1} parent=51 // pred_region
          %s641 = sand.u32 %s141, 1
          %s642 = scalar_lea.sflag [#allocation4], %s641
          %s643 = sand.u32 %s141, 1
          %s644 = smul.addr %s643, 64
          %s645 = scalar_lea.vmem [#allocation5], %s644
          %646 = dma.done %s642, 1024
        $region56: #{tpu_custom_call.1} parent=51 // pred_fallthru
          _
      $region52: #{tpu_custom_call.1} parent=5 // pred_fallthru
        _
    $region6: #{tpu_custom_call.1} parent=1 // loop_footer
      %s21 = sadd.s32 1, %s17
    $region7: #{tpu_custom_call.1} parent=1 // loop_footer_branch
      %16 = sbr.rel target = $region3
    $region8: #{tpu_custom_call.1} parent=1 // loop_exit
      _
    %647 = vsyncpa [#allocation3], 1
    %s648 = scalar_lea.sflag [#allocation3], 1
    %649 = vsyncpa %s648, 1
    %650 = vsyncpa [#allocation4], 1
    %s651 = scalar_lea.sflag [#allocation4], 1
    %652 = vsyncpa %s651, 1

</llo_original>
